<compile_context>
chip_gen: v7x
topology: tpu7x:2x2x1
jax: 0.10.0
libtpu: 0.0.40
codegen_flags: <defaults>
</compile_context>

<pallas_src>
import math

import jax
import jax.numpy as jnp
from jax.experimental import pallas as pl
from jax.experimental.pallas import tpu as pltpu

NUM_CLASSES = 10   # num_classes used by the original module's eta clamp
LANES = 128
SUBLANES = 8


def _weightfun_kernel(scale_ref, loss_ref, out_ref):
    # scale_ref: SMEM (1,)  holding -1/eta
    # loss_ref : VMEM (block_rows, 128)
    # out_ref  : VMEM (block_rows, 128)
    neg_inv_eta = scale_ref[0]
    w = loss_ref[...] * neg_inv_eta + 1.0          # FMA on the VPU
    out_ref[...] = jnp.maximum(w, 0.0)             # single max replaces cmp+select


def weightfun_forward(loss, eta_value, *, num_classes=NUM_CLASSES,
                      block_rows=1024, force_pallas=False):
    """JAX/Pallas equivalent of Weightfun.forward.

    loss:      float32 vector of shape (N,)
    eta_value: float32 scalar parameter (the nn.Parameter, init 5.0)
    returns:   float32 vector of shape (N,)
    """
    loss = jnp.asarray(loss, jnp.float32)
    n = loss.shape[0]

    eta = jnp.clip(jnp.asarray(eta_value, jnp.float32),
                   math.log(num_classes), 20.0)
    neg_inv_eta = (-1.0 / eta).reshape((1,))       # scalar reciprocal, once

    # Small-N fast path: launch/pad overhead dwarfs the 2-op elementwise math,
    # and XLA fuses this into neighbors for free.
    if not force_pallas and n < (1 << 17):
        return jnp.maximum(loss * neg_inv_eta[0] + 1.0, 0.0)

    # Lane-dense layout: rows of 128 lanes, rows rounded up to a multiple of 8
    # sublanes; pad only the ragged tail (< one block).
    rows = max(SUBLANES, pl.cdiv(n, LANES))
    rows = ((rows + SUBLANES - 1) // SUBLANES) * SUBLANES
    br = min(block_rows, rows)
    br = ((br + SUBLANES - 1) // SUBLANES) * SUBLANES
    rows_pad = pl.cdiv(rows, br) * br
    n_pad = rows_pad * LANES

    loss2d = jnp.pad(loss, (0, n_pad - n)).reshape(rows_pad, LANES)

    out = pl.pallas_call(
        _weightfun_kernel,
        out_shape=jax.ShapeDtypeStruct((rows_pad, LANES), jnp.float32),
        grid=(rows_pad // br,),
        in_specs=[
            pl.BlockSpec(memory_space=pltpu.SMEM),            # -1/eta scalar
            pl.BlockSpec((br, LANES), lambda i: (i, 0)),      # loss block
        ],
        out_specs=pl.BlockSpec((br, LANES), lambda i: (i, 0)),
        compiler_params=pltpu.CompilerParams(
            dimension_semantics=("parallel",)),
    )(neg_inv_eta, loss2d)

    return out.reshape(-1)[:n]


if __name__ == "__main__":
    key = jax.random.PRNGKey(0)
    # Small batch of per-sample losses with a ragged tail (not a multiple of
    # 128) so padding / partial-tile handling is exercised. Values span both
    # sides of eta (= 5.0) so both branches of the weighting are hit.
    n = 4099
    loss = jax.random.uniform(key, (n,), jnp.float32, minval=0.0, maxval=10.0)

    eta_value = jnp.float32(5.0)   # deterministic init of the nn.Parameter

    # Force the Pallas path so the kernel actually runs at this small size.
    weight = weightfun_forward(loss, eta_value, force_pallas=True)
    weight = jax.block_until_ready(weight)

    # Pure-JAX reference for sanity.
    eta = jnp.clip(eta_value, math.log(NUM_CLASSES), 20.0)
    ref = jnp.where(loss > eta, 0.0, -loss / eta + 1.0)
    assert weight.shape == loss.shape
    assert jnp.allclose(weight, ref, atol=1e-6), (weight, ref)

    # Also sanity-check the small-N fast path (pure jnp, no Pallas launch).
    w_small = jax.block_until_ready(weightfun_forward(loss[:8], eta_value))
    assert jnp.allclose(w_small, ref[:8], atol=1e-6)

    print("KERNEL_OK")
</pallas_src>

<mosaic_0001>
module attributes {stable_mosaic.version = 11 : i64} {
  func.func @_weightfun_kernel(%arg0: i32, %arg1: memref<1xf32, #tpu.memory_space<smem>>, %arg2: memref<40x128xf32, #tpu.memory_space<vmem>>, %arg3: memref<40x128xf32, #tpu.memory_space<vmem>>) attributes {dimension_semantics = [#tpu.dimension_semantics<parallel>], iteration_bounds = array<i64: 1>, scalar_prefetch = 0 : i64, scratch_operands = 0 : i64, tpu.core_type = #tpu.core_type<tc>, window_params = [{transform_indices = @transform_0, window_bounds = array<i64: 1>}, {transform_indices = @transform_1, window_bounds = array<i64: 40, 128>}, {transform_indices = @transform_2, window_bounds = array<i64: 40, 128>}]} {
    %c0 = arith.constant 0 : index
    %0 = memref.load %arg1[%c0] : memref<1xf32, #tpu.memory_space<smem>>
    %c0_0 = arith.constant 0 : index
    %c0_1 = arith.constant 0 : index
    %1 = vector.load %arg2[%c0_0, %c0_1] : memref<40x128xf32, #tpu.memory_space<vmem>>, vector<40x128xf32>
    %2 = vector.broadcast %0 : f32 to vector<40x128xf32>
    %3 = arith.mulf %1, %2 : vector<40x128xf32>
    %cst = arith.constant 1.000000e+00 : f32
    %4 = vector.broadcast %cst : f32 to vector<40x128xf32>
    %5 = arith.addf %3, %4 : vector<40x128xf32>
    %cst_2 = arith.constant 0.000000e+00 : f32
    %6 = vector.broadcast %cst_2 : f32 to vector<40x128xf32>
    %7 = arith.maximumf %5, %6 : vector<40x128xf32>
    %c0_3 = arith.constant 0 : index
    %c0_4 = arith.constant 0 : index
    %8 = vector.load %arg3[%c0_3, %c0_4] : memref<40x128xf32, #tpu.memory_space<vmem>>, vector<40x128xf32>
    tpu.vector_store %arg3[%c0_3, %c0_4], %7 {strides = array<i32>} : memref<40x128xf32, #tpu.memory_space<vmem>>, vector<40x128xf32>,
    return
  }
  func.func @transform_0(%arg0: i32) -> i32 {
    %c0_i32 = arith.constant 0 : i32
    %c0_i32_0 = arith.constant 0 : i32
    return %c0_i32 : i32
  }
  func.func @transform_1(%arg0: i32) -> (i32, i32) {
    %c0_i32 = arith.constant 0 : i32
    %c0_i32_0 = arith.constant 0 : i32
    return %arg0, %c0_i32 : i32, i32
  }
  func.func @transform_2(%arg0: i32) -> (i32, i32) {
    %c0_i32 = arith.constant 0 : i32
    %c0_i32_0 = arith.constant 0 : i32
    return %arg0, %c0_i32 : i32, i32
  }
}

</mosaic_0001>

<llo_original>
// kernel: tpu_custom_call.1
$region0: #{tpu_custom_call.1}
  #allocation0 [shape = 'u32[]', space=smem, size = 0x4, offset = 0x4, fixed_abs, tag = 'smem constant byte address 0x4 - core index']
  #allocation1 [shape = 'u32[144,128]{1,0:T(1,128)}', space=vmem, size = 0x12000, scoped, tag = 'internal scratch']
  #allocation2 [shape = 'f32[1]{0:T(128)S(6)}', space=smem, size = 0x200, scoped, tag = 'scoped memory for tpu_custom_call.1']
  %s0 = inlined_call_operand.<no memory space> [shape: f32[1], index: 0, kind: input, shape index: {}]
  %s1 = inlined_call_operand.hbm [shape: f32[40,128], index: 1, kind: input, shape index: {}]
  %s2 = inlined_call_operand.hbm [shape: f32[40,128], index: 2, kind: output, shape index: {}]
  %s3 = sld [smem:[#allocation0]]
  $region22: #{tpu_custom_call.1} parent=0
    _
  %s5 = ssub.s32 1, %s3
  %s6 = scalar_select 0, %s5, %s3
  %7 = sst [smem:[#allocation2]] %s0
  $region1: #{tpu_custom_call.1} parent=0
    #allocation3 [shape = 'u8[20480]{0}', space=vmem, size = 0x5000, scoped, tag = 'input window, operand 1, single buffered']
    #allocation4 [shape = 's32[1]{0}', space=sflag, size = 0x4, scoped, tag = 'scoped memory for tpu_custom_call.1']
    #allocation5 [shape = 's32[1]{0}', space=sflag, size = 0x4, scoped, tag = 'scoped memory for tpu_custom_call.1']
    #allocation6 [shape = 'u8[20480]{0}', space=vmem, size = 0x5000, scoped, tag = 'output window, operand 0, single buffered']
    %8 = vsyncpa [#allocation4], 0
    %9 = vsyncpa [#allocation5], 0
    // Predicated region
    $region2: #{tpu_custom_call.1} parent=1 // pred_check
      _
    $region3: #{tpu_custom_call.1} parent=1 // pred_check_branch
      %11 = sbr.rel (0) target = $region5
    $region4: #{tpu_custom_call.1} parent=1 // pred_region
      _
    $region5: #{tpu_custom_call.1} parent=1 // pred_fallthru
      _
    // Predicated region
    $region6: #{tpu_custom_call.1} parent=1 // pred_check
      _
    $region7: #{tpu_custom_call.1} parent=1 // pred_check_branch
      %13 = sbr.rel (0) target = $region9
    $region8: #{tpu_custom_call.1} parent=1 // pred_region
      %s15 = ssub.s32 640, 640
      %16 = vsyncadd [#allocation4], %s15
      %s17 = sshll.u32 [#allocation3], 4
      %s18 = int_to_ptr.vmem [resolvable:$true] %s17
      %23 = dma.hbm_to_vmem [thread:$0]  %s1, 640, %s18, [#allocation4], 128, 128, 8
    $region9: #{tpu_custom_call.1} parent=1 // pred_fallthru
      _
    // Predicated region
    $region10: #{tpu_custom_call.1} parent=1 // pred_check
      _
    $region11: #{tpu_custom_call.1} parent=1 // pred_check_branch
      %25 = sbr.rel (0) target = $region13
    $region12: #{tpu_custom_call.1} parent=1 // pred_region
      %26 = dma.done [#allocation4], 640
    $region13: #{tpu_custom_call.1} parent=1 // pred_fallthru
      _
    %s27 = sld [smem:[#allocation2]]
    %v28 = vld [vmem:[#allocation3] sm:$0xff]
    %v29 = vld [vmem:[#allocation3 + $0x8] sm:$0xff]
    %v30 = vld [vmem:[#allocation3 + $0x10] sm:$0xff]
    %v31 = vld [vmem:[#allocation3 + $0x18] sm:$0xff]
    %v32 = vld [vmem:[#allocation3 + $0x20] sm:$0xff]
    %v33 = vstv %s27
    %v34 = vmul.f32 %v28, %v33
    %v35 = vmul.f32 %v29, %v33
    %v36 = vmul.f32 %v30, %v33
    %v37 = vmul.f32 %v31, %v33
    %v38 = vmul.f32 %v32, %v33
    %v39 = vadd.f32 %v34, 1.0
    %v40 = vadd.f32 %v35, 1.0
    %v41 = vadd.f32 %v36, 1.0
    %v42 = vadd.f32 %v37, 1.0
    %v43 = vadd.f32 %v38, 1.0
    %v44 = vmax.f32 %v39, 0.0
    %v45 = vmax.f32 %v40, 0.0
    %v46 = vmax.f32 %v41, 0.0
    %v47 = vmax.f32 %v42, 0.0
    %v48 = vmax.f32 %v43, 0.0
    %49 = vst [vmem:[#allocation6] sm:$0xff] %v44
    %50 = vst [vmem:[#allocation6 + $0x8] sm:$0xff] %v45
    %51 = vst [vmem:[#allocation6 + $0x10] sm:$0xff] %v46
    %52 = vst [vmem:[#allocation6 + $0x18] sm:$0xff] %v47
    %53 = vst [vmem:[#allocation6 + $0x20] sm:$0xff] %v48
    // Predicated region
    $region14: #{tpu_custom_call.1} parent=1 // pred_check
      _
    $region15: #{tpu_custom_call.1} parent=1 // pred_check_branch
      %55 = sbr.rel (0) target = $region17
    $region16: #{tpu_custom_call.1} parent=1 // pred_region
      %s57 = ssub.s32 640, 640
      %58 = vsyncadd [#allocation5], %s57
      %s59 = sshll.u32 [#allocation6], 4
      %s60 = int_to_ptr.vmem [resolvable:$true] %s59
      %65 = dma.vmem_to_hbm [thread:$0]  %s60, 640, %s2, [#allocation5], 128, 128, 8
    $region17: #{tpu_custom_call.1} parent=1 // pred_fallthru
      _
    // Predicated region
    $region18: #{tpu_custom_call.1} parent=1 // pred_check
      _
    $region19: #{tpu_custom_call.1} parent=1 // pred_check_branch
      %67 = sbr.rel (0) target = $region21
    $region20: #{tpu_custom_call.1} parent=1 // pred_region
      %68 = dma.done [#allocation5], 640
    $region21: #{tpu_custom_call.1} parent=1 // pred_fallthru
      _
    %69 = vsyncpa [#allocation4], 1
    %70 = vsyncpa [#allocation5], 1

</llo_original>
